<compile_context>
chip_gen: v6e
topology: v6e:2x2x1
jax: 0.10.0
libtpu: 0.0.40
codegen_flags: <defaults>
</compile_context>

<pallas_src>
import functools
import math

import jax
import jax.numpy as jnp
from jax import lax
from jax.experimental import pallas as pl
from jax.experimental.pallas import tpu as pltpu

_INV_SQRT2 = 0.7071067811865476


def _round_up(x, m):
    return (x + m - 1) // m * m


def _sublane_multiple(dtype):
    isz = jnp.dtype(dtype).itemsize
    if isz >= 4:
        return 8
    if isz == 2:
        return 16
    return 32


def _vmem_capacity_bytes():
    try:
        return int(pltpu.get_tpu_info().vmem_capacity_bytes)
    except Exception:
        return 64 << 20  # conservative (v7x-sized) fallback


def _mlp_proj_kernel(x_ref, w1_ref, b1_ref, w2_ref, b2_ref, o_ref, h_ref):
    # x_ref:  (tm, rec)     token row tile
    # w1_ref: (rec, llm)    first-layer weight (resident, single buffer)
    # b1_ref: (1,  llm)     f32 bias (resident, single buffer)
    # w2_ref: (llm, tn)     column tile of second-layer weight
    # b2_ref: (1,  tn)      f32 bias tile
    # o_ref:  (tm, tn)      output tile
    # h_ref:  (tm, llm)     scratch: gelu(x @ W1 + b1), reused across j

    # Hidden activation computed once per row tile (first column step).
    @pl.when(pl.program_id(1) == 0)
    def _():
        h = jnp.dot(x_ref[...], w1_ref[...],
                    preferred_element_type=jnp.float32)
        h = h + b1_ref[...]
        # Exact (erf-based) GELU -> matches torch.nn.GELU default.
        h = 0.5 * h * (1.0 + lax.erf(h * jnp.float32(_INV_SQRT2)))
        h_ref[...] = h.astype(h_ref.dtype)

    # Second linear over one column tile of W2, f32 accumulation.
    y = jnp.dot(h_ref[...], w2_ref[...], preferred_element_type=jnp.float32)
    o_ref[...] = (y + b2_ref[...]).astype(o_ref.dtype)


def mlp_projector_pallas(x, w1, b1, w2, b2, *, tm=None, interpret=False):
    """x: [batch, seq, rec] -> [batch, seq, llm].  Weights: [in, out]."""
    batch, seq, rec = x.shape
    rec_w, llm = w1.shape
    assert rec_w == rec and w2.shape == (llm, llm)
    assert b1.shape == (llm,) and b2.shape == (llm,)
    M = batch * seq

    isz_x = jnp.dtype(x.dtype).itemsize
    isz_w = jnp.dtype(w1.dtype).itemsize
    isz_o = isz_x
    sub = max(_sublane_multiple(x.dtype), _sublane_multiple(w1.dtype))

    vmem_cap = _vmem_capacity_bytes()
    big_vmem = vmem_cap >= (96 << 20)        # v5e/v6e (128 MiB) vs v7x (64 MiB)
    budget = vmem_cap - (8 << 20)            # leave headroom for compiler scratch

    # Lane-align the feature dim so W2 can be streamed in 128-wide column
    # tiles; padded columns are exactly zero and get sliced off at the end.
    llm_p = _round_up(llm, 128)

    # ---- choose row tile (tm) and W2 column tile (tn) ----
    if tm is None:
        tm = 1024 if big_vmem else 512       # per-generation default
    tm0 = max(sub, _round_up(tm, sub))
    tm0 = min(tm0, _round_up(M, sub))        # don't over-pad tiny inputs

    tn_candidates = [llm_p] + [d for d in (4096, 2048, 1024, 512, 256, 128)
                               if d < llm_p and llm_p % d == 0]

    def vmem_est(tm_c, tn_c):
        nt = llm_p // tn_c
        w2_bufs = 1 if nt == 1 else 2
        return (2 * tm_c * rec * isz_x             # x tiles (double-buffered)
                + rec * llm_p * isz_w              # W1 (single buffer)
                + llm_p * 4                        # b1 (single buffer)
                + w2_bufs * llm_p * tn_c * isz_w   # W2 column tile(s)
                + w2_bufs * tn_c * 4               # b2
                + 2 * tm_c * tn_c * isz_o          # output tiles
                + tm_c * llm_p * isz_w             # h scratch
                + tm_c * llm_p * 4                 # f32 GELU intermediate
                + tm_c * tn_c * 4)                 # f32 y intermediate

    tm_sel = tn_sel = None
    tm_c = tm0
    while True:
        for tn_c in tn_candidates:                 # prefer resident W2 (tn=llm_p)
            if vmem_est(tm_c, tn_c) <= budget:
                tm_sel, tn_sel = tm_c, tn_c
                break
        if tm_sel is not None or tm_c <= sub:
            break
        tm_c = max(sub, _round_up(tm_c // 2, sub))
    if tm_sel is None:                             # nothing fit; smallest config
        tm_sel, tn_sel = sub, tn_candidates[-1]
    tm, tn = tm_sel, tn_sel
    nt = llm_p // tn

    # v7x has 2 TensorCores: make sure both get a row tile when possible.
    if (not big_vmem) and M > sub and _round_up(M, tm) // tm < 2:
        tm = max(sub, _round_up((M + 1) // 2, sub))

    Mp = _round_up(M, tm)

    # ---- prepare operands (flatten, pad M and llm) ----
    x2 = x.reshape(M, rec)
    if Mp != M:
        x2 = jnp.pad(x2, ((0, Mp - M), (0, 0)))

    w1_p, b1_p, w2_p, b2_p = w1, b1, w2, b2
    if llm_p != llm:
        w1_p = jnp.pad(w1, ((0, 0), (0, llm_p - llm)))
        b1_p = jnp.pad(b1, ((0, llm_p - llm),))
        w2_p = jnp.pad(w2, ((0, llm_p - llm), (0, llm_p - llm)))
        b2_p = jnp.pad(b2, ((0, llm_p - llm),))
    b1_2 = b1_p.reshape(1, llm_p).astype(jnp.float32)
    b2_2 = b2_p.reshape(1, llm_p).astype(jnp.float32)

    resident_w2 = (nt == 1)
    if resident_w2:
        # Fetched once for the whole grid; single buffer (constant index map).
        w2_op = w2_p
        w2_spec = pl.BlockSpec((llm_p, tn), lambda i, j: (0, j),
                               pipeline_mode=pl.Buffered(1))
        b2_spec = pl.BlockSpec((1, tn), lambda i, j: (0, j),
                               pipeline_mode=pl.Buffered(1))
    else:
        # Streamed path: pre-tile W2 to [nt, llm_p, tn] so every column-tile
        # DMA is one contiguous block instead of llm_p strided rows.
        # TODO(synk): ideally pre-tile once at weight-load time, not per call.
        w2_op = w2_p.reshape(llm_p, nt, tn).transpose(1, 0, 2)
        w2_spec = pl.BlockSpec((None, llm_p, tn), lambda i, j: (j, 0, 0))
        b2_spec = pl.BlockSpec((1, tn), lambda i, j: (0, j))

    est = vmem_est(tm, tn)
    vmem_limit = int(min(vmem_cap - (2 << 20),
                         max(32 << 20, int(est * 1.25) + (4 << 20))))

    out2 = pl.pallas_call(
        _mlp_proj_kernel,
        out_shape=jax.ShapeDtypeStruct((Mp, llm_p), x.dtype),
        grid_spec=pltpu.PrefetchScalarGridSpec(
            num_scalar_prefetch=0,
            grid=(Mp // tm, nt),
            in_specs=[
                pl.BlockSpec((tm, rec), lambda i, j: (i, 0)),         # x rows
                pl.BlockSpec((rec, llm_p), lambda i, j: (0, 0),
                             pipeline_mode=pl.Buffered(1)),           # W1
                pl.BlockSpec((1, llm_p), lambda i, j: (0, 0),
                             pipeline_mode=pl.Buffered(1)),           # b1
                w2_spec,                                               # W2
                b2_spec,                                               # b2
            ],
            out_specs=pl.BlockSpec((tm, tn), lambda i, j: (i, j)),
            scratch_shapes=[pltpu.VMEM((tm, llm_p), w2.dtype)],        # h
        ),
        compiler_params=pltpu.CompilerParams(
            dimension_semantics=("parallel", "arbitrary"),
            vmem_limit_bytes=vmem_limit,
        ),
        interpret=interpret,
    )(x2, w1_p, b1_2, w2_op, b2_2)

    return out2[:M, :llm].reshape(batch, seq, llm)


def _reference(x, w1, b1, w2, b2):
    h = jnp.einsum("bsr,rl->bsl", x, w1) + b1
    h = jax.nn.gelu(h, approximate=False)
    return jnp.einsum("bsl,lm->bsm", h, w2) + b2


if __name__ == "__main__":
    # Small shapes consistent with the module (rec_size -> llm_size MLP).
    batch, seq = 2, 8
    rec_size, llm_size = 64, 256

    key = jax.random.PRNGKey(0)
    kx, kw1, kb1, kw2, kb2 = jax.random.split(key, 5)

    x = jax.random.normal(kx, (batch, seq, rec_size), dtype=jnp.float32)

    # nn.Linear-style uniform init, stored as [in_features, out_features].
    lim1 = 1.0 / math.sqrt(rec_size)
    w1 = jax.random.uniform(kw1, (rec_size, llm_size), jnp.float32, -lim1, lim1)
    b1 = jax.random.uniform(kb1, (llm_size,), jnp.float32, -lim1, lim1)
    lim2 = 1.0 / math.sqrt(llm_size)
    w2 = jax.random.uniform(kw2, (llm_size, llm_size), jnp.float32, -lim2, lim2)
    b2 = jax.random.uniform(kb2, (llm_size,), jnp.float32, -lim2, lim2)

    fn = jax.jit(functools.partial(mlp_projector_pallas))
    out = jax.block_until_ready(fn(x, w1, b1, w2, b2))

    ref = _reference(x, w1, b1, w2, b2)
    assert out.shape == (batch, seq, llm_size)
    assert jnp.allclose(out, ref, atol=1e-4, rtol=1e-4), "mismatch vs reference"

    print("KERNEL_OK")
</pallas_src>

<mosaic_0001>
module attributes {stable_mosaic.version = 11 : i64} {
  func.func @_mlp_proj_kernel(%arg0: i32, %arg1: i32, %arg2: memref<8x64xf32, #tpu.memory_space<vmem>>, %arg3: memref<64x256xf32, #tpu.memory_space<vmem>>, %arg4: memref<1x256xf32, #tpu.memory_space<vmem>>, %arg5: memref<256x256xf32, #tpu.memory_space<vmem>>, %arg6: memref<1x256xf32, #tpu.memory_space<vmem>>, %arg7: memref<8x256xf32, #tpu.memory_space<vmem>>, %arg8: memref<8x256xf32, #tpu.memory_space<vmem>>) attributes {dimension_semantics = [#tpu.dimension_semantics<parallel>, #tpu.dimension_semantics<arbitrary>], iteration_bounds = array<i64: 2, 1>, scalar_prefetch = 0 : i64, scratch_operands = 1 : i64, tpu.core_type = #tpu.core_type<tc>, window_params = [{transform_indices = @transform_0, window_bounds = array<i64: 8, 64>}, {pipeline_mode = #tpu.pipeline_mode<synchronous>, transform_indices = @transform_1, window_bounds = array<i64: 64, 256>}, {pipeline_mode = #tpu.pipeline_mode<synchronous>, transform_indices = @transform_2, window_bounds = array<i64: 1, 256>}, {pipeline_mode = #tpu.pipeline_mode<synchronous>, transform_indices = @transform_3, window_bounds = array<i64: 256, 256>}, {pipeline_mode = #tpu.pipeline_mode<synchronous>, transform_indices = @transform_4, window_bounds = array<i64: 1, 256>}, {transform_indices = @transform_5, window_bounds = array<i64: 8, 256>}]} {
    %c0_i32 = arith.constant 0 : i32
    %0 = arith.cmpi eq, %arg1, %c0_i32 : i32
    %1 = arith.extui %0 : i1 to i32
    %c0_i32_0 = arith.constant 0 : i32
    %2 = arith.cmpi ne, %1, %c0_i32_0 : i32
    scf.if %2 {
      %c0_8 = arith.constant 0 : index
      %c0_9 = arith.constant 0 : index
      %10 = vector.load %arg2[%c0_8, %c0_9] : memref<8x64xf32, #tpu.memory_space<vmem>>, vector<8x64xf32>
      %c0_10 = arith.constant 0 : index
      %c0_11 = arith.constant 0 : index
      %11 = vector.load %arg3[%c0_10, %c0_11] : memref<64x256xf32, #tpu.memory_space<vmem>>, vector<64x256xf32>
      %cst_12 = arith.constant dense<0.000000e+00> : vector<8x256xf32>
      %12 = tpu.matmul %10, %11, %cst_12 {dimension_numbers = #tpu.dot_dimension_numbers<[1], [0], [0], [1], [0, 0, 1, 1], [], []>} : vector<8x64xf32>, vector<64x256xf32>, vector<8x256xf32> -> vector<8x256xf32>
      %c0_13 = arith.constant 0 : index
      %c0_14 = arith.constant 0 : index
      %13 = vector.load %arg4[%c0_13, %c0_14] : memref<1x256xf32, #tpu.memory_space<vmem>>, vector<1x256xf32>
      %14 = vector.broadcast %13 : vector<1x256xf32> to vector<8x256xf32>
      %15 = arith.addf %12, %14 : vector<8x256xf32>
      %cst_15 = arith.constant 5.000000e-01 : f32
      %16 = vector.broadcast %cst_15 : f32 to vector<8x256xf32>
      %17 = arith.mulf %16, %15 : vector<8x256xf32>
      %cst_16 = arith.constant 0.707106769 : f32
      %18 = vector.broadcast %cst_16 : f32 to vector<8x256xf32>
      %19 = arith.mulf %15, %18 : vector<8x256xf32>
      %20 = math.erf %19 : vector<8x256xf32>
      %cst_17 = arith.constant 1.000000e+00 : f32
      %21 = vector.broadcast %cst_17 : f32 to vector<8x256xf32>
      %22 = arith.addf %21, %20 : vector<8x256xf32>
      %23 = arith.mulf %17, %22 : vector<8x256xf32>
      %c0_18 = arith.constant 0 : index
      %c0_19 = arith.constant 0 : index
      %24 = vector.load %arg8[%c0_18, %c0_19] : memref<8x256xf32, #tpu.memory_space<vmem>>, vector<8x256xf32>
      tpu.vector_store %arg8[%c0_18, %c0_19], %23 {strides = array<i32>} : memref<8x256xf32, #tpu.memory_space<vmem>>, vector<8x256xf32>,
    } else {
    }
    %c0 = arith.constant 0 : index
    %c0_1 = arith.constant 0 : index
    %3 = vector.load %arg8[%c0, %c0_1] : memref<8x256xf32, #tpu.memory_space<vmem>>, vector<8x256xf32>
    %c0_2 = arith.constant 0 : index
    %c0_3 = arith.constant 0 : index
    %4 = vector.load %arg5[%c0_2, %c0_3] : memref<256x256xf32, #tpu.memory_space<vmem>>, vector<256x256xf32>
    %cst = arith.constant dense<0.000000e+00> : vector<8x256xf32>
    %5 = tpu.matmul %3, %4, %cst {dimension_numbers = #tpu.dot_dimension_numbers<[1], [0], [0], [1], [0, 0, 1, 1], [], []>} : vector<8x256xf32>, vector<256x256xf32>, vector<8x256xf32> -> vector<8x256xf32>
    %c0_4 = arith.constant 0 : index
    %c0_5 = arith.constant 0 : index
    %6 = vector.load %arg6[%c0_4, %c0_5] : memref<1x256xf32, #tpu.memory_space<vmem>>, vector<1x256xf32>
    %7 = vector.broadcast %6 : vector<1x256xf32> to vector<8x256xf32>
    %8 = arith.addf %5, %7 : vector<8x256xf32>
    %c0_6 = arith.constant 0 : index
    %c0_7 = arith.constant 0 : index
    %9 = vector.load %arg7[%c0_6, %c0_7] : memref<8x256xf32, #tpu.memory_space<vmem>>, vector<8x256xf32>
    tpu.vector_store %arg7[%c0_6, %c0_7], %8 {strides = array<i32>} : memref<8x256xf32, #tpu.memory_space<vmem>>, vector<8x256xf32>,
    return
  }
  func.func @transform_0(%arg0: i32, %arg1: i32) -> (i32, i32) {
    %c0_i32 = arith.constant 0 : i32
    %c0_i32_0 = arith.constant 0 : i32
    return %arg0, %c0_i32 : i32, i32
  }
  func.func @transform_1(%arg0: i32, %arg1: i32) -> (i32, i32) {
    %c0_i32 = arith.constant 0 : i32
    %c0_i32_0 = arith.constant 0 : i32
    %c0_i32_1 = arith.constant 0 : i32
    return %c0_i32, %c0_i32_0 : i32, i32
  }
  func.func @transform_2(%arg0: i32, %arg1: i32) -> (i32, i32) {
    %c0_i32 = arith.constant 0 : i32
    %c0_i32_0 = arith.constant 0 : i32
    %c0_i32_1 = arith.constant 0 : i32
    return %c0_i32, %c0_i32_0 : i32, i32
  }
  func.func @transform_3(%arg0: i32, %arg1: i32) -> (i32, i32) {
    %c0_i32 = arith.constant 0 : i32
    %c0_i32_0 = arith.constant 0 : i32
    return %c0_i32, %arg1 : i32, i32
  }
  func.func @transform_4(%arg0: i32, %arg1: i32) -> (i32, i32) {
    %c0_i32 = arith.constant 0 : i32
    %c0_i32_0 = arith.constant 0 : i32
    return %c0_i32, %arg1 : i32, i32
  }
  func.func @transform_5(%arg0: i32, %arg1: i32) -> (i32, i32) {
    %c0_i32 = arith.constant 0 : i32
    return %arg0, %arg1 : i32, i32
  }
}

</mosaic_0001>

<llo_original>
// kernel: mlp_projector_pallas.1
$region0: #{mlp_projector_pallas.1}
  #allocation0 [shape = 'u32[]', space=smem, size = 0x4, offset = 0x4, fixed_abs, tag = 'smem constant byte address 0x4 - core index']
  #allocation1 [shape = 'u32[144,128]{1,0:T(1,128)}', space=vmem, size = 0x12000, scoped, tag = 'internal scratch']
  #allocation2 [shape = 'f32[8,256]{1,0:T(8,128)}', space=vmem, size = 0x2000, scoped, tag = 'scratch operand']
  %s0 = inlined_call_operand.hbm [shape: f32[16,64], index: 0, kind: input, shape index: {}]
  %s1 = inlined_call_operand.hbm [shape: f32[64,256], index: 1, kind: input, shape index: {}]
  %s2 = inlined_call_operand.vmem [shape: f32[1,256], index: 2, kind: input, shape index: {}]
  %s3 = inlined_call_operand.hbm [shape: f32[256,256], index: 3, kind: input, shape index: {}]
  %s4 = inlined_call_operand.vmem [shape: f32[1,256], index: 4, kind: input, shape index: {}]
  %s5 = inlined_call_operand.hbm [shape: f32[16,256], index: 5, kind: output, shape index: {}]
  %s6 = sld [smem:[#allocation0]]
  $region69: #{mlp_projector_pallas.1} parent=0
    _
  %s8 = ssub.s32 1, %s6
  %s9 = scalar_select 0, %s8, %s6
  $region1: #{mlp_projector_pallas.1} parent=0
    #allocation3 [shape = 'u8[8192]{0}', space=vmem, size = 0x2000, scoped, tag = 'input window, operand 0']
    #allocation4 [shape = 's32[2]{0}', space=sflag, size = 0x8, scoped, tag = 'scoped memory for mlp_projector_pallas.1']
    #allocation5 [shape = 's32[2]{0}', space=sflag, size = 0x8, scoped, tag = 'scoped memory for mlp_projector_pallas.1']
    #allocation6 [shape = 'u8[65536]{0}', space=vmem, size = 0x10000, scoped, tag = 'input window, operand 1, single buffered']
    #allocation7 [shape = 's32[1]{0}', space=sflag, size = 0x4, scoped, tag = 'scoped memory for mlp_projector_pallas.1']
    #allocation8 [shape = 'u8[262144]{0}', space=vmem, size = 0x40000, scoped, tag = 'input window, operand 3, single buffered']
    #allocation9 [shape = 'u8[16384]{0}', space=vmem, size = 0x4000, scoped, tag = 'output window, operand 0']
    %10 = vsyncpa [#allocation4], 0
    %s11 = scalar_lea.sflag [#allocation4], 1
    %12 = vsyncpa %s11, 0
    %13 = vsyncpa [#allocation7], 0
    %14 = vsyncpa [#allocation5], 0
    %s15 = scalar_lea.sflag [#allocation5], 1
    %16 = vsyncpa %s15, 0
    loop: start=0, step=1, limit=4
    $region2: #{mlp_projector_pallas.1} parent=1 // loop_pre_header
      _
    $region3: #{mlp_projector_pallas.1} parent=1 // loop_header
      %s18 = sphi 0, %s22
      %p19 = scmp.ge.s32.totalorder %s18, 4
      %s25 = sphi 0, %s37
      %s26 = sphi 0, %s33
      %s27 = sphi 0, %s25
      %s28 = sphi 0, %s26
      %s29 = sphi 0, %s27
      %s30 = sphi 0, %s28
      %s40 = sphi 0, %s42
      %s43 = sphi 0, %s40
      %s44 = sphi 0, %s43
      %s60 = sphi 0, %s44
      %s64 = sphi 0, %s64
      %s66 = sphi 0, %s64
      %s67 = sphi 0, %s66
      %s81 = sphi 0, %s67
      %s85 = sphi 0, %s85
      %s87 = sphi 0, %s85
      %s88 = sphi 0, %s87
      %s102 = sphi 0, %s88
      %s108 = sphi 0, %s110
      %s111 = sphi 0, %s108
      %s112 = sphi 0, %s111
      %s128 = sphi 0, %s112
      %s134 = sphi 0, %s136
      %s137 = sphi 0, %s134
      %s138 = sphi 0, %s137
      %s154 = sphi 0, %s138
      %s162 = sphi 0, %s164
      %s165 = sphi 0, %s162
      %s166 = sphi 0, %s165
      %s182 = sphi 0, %s166
    $region4: #{mlp_projector_pallas.1} parent=1 // loop_header_branch
      %21 = sbr.rel (%p19) target = $region8
    $region5: #{mlp_projector_pallas.1} parent=1 // loop_body
      %s23 = ssub.s32 %s18, 1
      %s24 = ssub.s32 %s18, 2
      %s31 = sadd.s32 1, %s26
      %p32 = scmp.ge.s32.totalorder %s31, 1
      %s33 = scalar_select %p32, 0, %s31
      %s34 = sadd.s32 1, %s25
      %s35 = scalar_select %p32, %s34, %s25
      %p36 = scmp.ge.s32.totalorder %s35, 2
      %s37 = scalar_select %p36, 0, %s35
      %s38 = ssub.s32 %s25, %s37
      %p39 = scmp.eq.s32.totalorder %s38, 0
      %s41 = sadd.s32 %s40, 1
      %s42 = scalar_select %p39, %s40, %s41
      %p45 = pneg %p39
      %p46 = scmp.eq.s32.totalorder %s18, 1
      %p47 = por %p45, %p46
      %p48 = scmp.ne.s32.totalorder %s40, %s43
      %p49 = scmp.eq.s32.totalorder %s18, 0
      %p50 = por %p48, %p49
      %p51 = scmp.ne.s32.totalorder %s40, %s43
      %p52 = scmp.eq.s32.totalorder %s23, 1
      %p53 = por %p51, %p52
      %p54 = scmp.ne.s32.totalorder %s43, %s44
      %p55 = scmp.eq.s32.totalorder %s23, 0
      %p56 = por %p54, %p55
      %p57 = scmp.ne.s32.totalorder %s43, %s44
      %p58 = scmp.eq.s32.totalorder %s24, 1
      %p59 = por %p57, %p58
      %p61 = scmp.ne.s32.totalorder %s44, %s60
      %p62 = scmp.eq.s32.totalorder %s24, 0
      %p63 = por %p61, %p62
      %s65 = sadd.s32 %s64, 1
      %p68 = scmp.eq.s32.totalorder %s18, 1
      %p69 = scmp.ne.s32.totalorder %s64, %s66
      %p70 = scmp.eq.s32.totalorder %s18, 0
      %p71 = por %p69, %p70
      %p72 = scmp.ne.s32.totalorder %s64, %s66
      %p73 = scmp.eq.s32.totalorder %s23, 1
      %p74 = por %p72, %p73
      %p75 = scmp.ne.s32.totalorder %s66, %s67
      %p76 = scmp.eq.s32.totalorder %s23, 0
      %p77 = por %p75, %p76
      %p78 = scmp.ne.s32.totalorder %s66, %s67
      %p79 = scmp.eq.s32.totalorder %s24, 1
      %p80 = por %p78, %p79
      %p82 = scmp.ne.s32.totalorder %s67, %s81
      %p83 = scmp.eq.s32.totalorder %s24, 0
      %p84 = por %p82, %p83
      %s86 = sadd.s32 %s85, 1
      %p89 = scmp.eq.s32.totalorder %s18, 1
      %p90 = scmp.ne.s32.totalorder %s85, %s87
      %p91 = scmp.eq.s32.totalorder %s18, 0
      %p92 = por %p90, %p91
      %p93 = scmp.ne.s32.totalorder %s85, %s87
      %p94 = scmp.eq.s32.totalorder %s23, 1
      %p95 = por %p93, %p94
      %p96 = scmp.ne.s32.totalorder %s87, %s88
      %p97 = scmp.eq.s32.totalorder %s23, 0
      %p98 = por %p96, %p97
      %p99 = scmp.ne.s32.totalorder %s87, %s88
      %p100 = scmp.eq.s32.totalorder %s24, 1
      %p101 = por %p99, %p100
      %p103 = scmp.ne.s32.totalorder %s88, %s102
      %p104 = scmp.eq.s32.totalorder %s24, 0
      %p105 = por %p103, %p104
      %s106 = ssub.s32 %s26, %s33
      %p107 = scmp.eq.s32.totalorder %s106, 0
      %s109 = sadd.s32 %s108, 1
      %s110 = scalar_select %p107, %s108, %s109
      %p113 = pneg %p107
      %p114 = scmp.eq.s32.totalorder %s18, 1
      %p115 = por %p113, %p114
      %p116 = scmp.ne.s32.totalorder %s108, %s111
      %p117 = scmp.eq.s32.totalorder %s18, 0
      %p118 = por %p116, %p117
      %p119 = scmp.ne.s32.totalorder %s108, %s111
      %p120 = scmp.eq.s32.totalorder %s23, 1
      %p121 = por %p119, %p120
      %p122 = scmp.ne.s32.totalorder %s111, %s112
      %p123 = scmp.eq.s32.totalorder %s23, 0
      %p124 = por %p122, %p123
      %p125 = scmp.ne.s32.totalorder %s111, %s112
      %p126 = scmp.eq.s32.totalorder %s24, 1
      %p127 = por %p125, %p126
      %p129 = scmp.ne.s32.totalorder %s112, %s128
      %p130 = scmp.eq.s32.totalorder %s24, 0
      %p131 = por %p129, %p130
      %s132 = ssub.s32 %s26, %s33
      %p133 = scmp.eq.s32.totalorder %s132, 0
      %s135 = sadd.s32 %s134, 1
      %s136 = scalar_select %p133, %s134, %s135
      %p139 = pneg %p133
      %p140 = scmp.eq.s32.totalorder %s18, 1
      %p141 = por %p139, %p140
      %p142 = scmp.ne.s32.totalorder %s134, %s137
      %p143 = scmp.eq.s32.totalorder %s18, 0
      %p144 = por %p142, %p143
      %p145 = scmp.ne.s32.totalorder %s134, %s137
      %p146 = scmp.eq.s32.totalorder %s23, 1
      %p147 = por %p145, %p146
      %p148 = scmp.ne.s32.totalorder %s137, %s138
      %p149 = scmp.eq.s32.totalorder %s23, 0
      %p150 = por %p148, %p149
      %p151 = scmp.ne.s32.totalorder %s137, %s138
      %p152 = scmp.eq.s32.totalorder %s24, 1
      %p153 = por %p151, %p152
      %p155 = scmp.ne.s32.totalorder %s138, %s154
      %p156 = scmp.eq.s32.totalorder %s24, 0
      %p157 = por %p155, %p156
      %s158 = ssub.s32 %s25, %s37
      %s159 = ssub.s32 %s26, %s33
      %s160 = sor.u32 %s158, %s159
      %p161 = scmp.eq.s32.totalorder %s160, 0
      %s163 = sadd.s32 %s162, 1
      %s164 = scalar_select %p161, %s162, %s163
      %p167 = pneg %p161
      %p168 = scmp.eq.s32.totalorder %s18, 1
      %p169 = por %p167, %p168
      %p170 = scmp.ne.s32.totalorder %s162, %s165
      %p171 = scmp.eq.s32.totalorder %s18, 0
      %p172 = por %p170, %p171
      %p173 = scmp.ne.s32.totalorder %s162, %s165
      %p174 = scmp.eq.s32.totalorder %s23, 1
      %p175 = por %p173, %p174
      %p176 = scmp.ne.s32.totalorder %s165, %s166
      %p177 = scmp.eq.s32.totalorder %s23, 0
      %p178 = por %p176, %p177
      %p179 = scmp.ne.s32.totalorder %s165, %s166
      %p180 = scmp.eq.s32.totalorder %s24, 1
      %p181 = por %p179, %p180
      %p183 = scmp.ne.s32.totalorder %s166, %s182
      %p184 = scmp.eq.s32.totalorder %s24, 0
      %p185 = por %p183, %p184
      %p186 = scmp.le.s32.totalorder 1, %s18
      %p187 = scmp.lt.s32.totalorder %s18, 3
      %p188 = pnand %p186, %p187
      %p189 = pneg %p188
      // Predicated region
      $region9: #{mlp_projector_pallas.1} parent=5 // pred_check
        _
      $region10: #{mlp_projector_pallas.1} parent=5 // pred_check_branch
        %191 = sbr.rel (%p188) target = $region12
      $region11: #{mlp_projector_pallas.1} parent=5 // pred_region
        %s192 = ssub.s32 %s18, 1
        // Predicated region
        $region13: #{mlp_projector_pallas.1} parent=11 // pred_check
          %p193 = pneg %p77
        $region14: #{mlp_projector_pallas.1} parent=11 // pred_check_branch
          %195 = sbr.rel (%p193) target = $region16
        $region15: #{mlp_projector_pallas.1} parent=11 // pred_region
          %s197 = ssub.s32 2048, 2048
          %198 = vsyncadd [#allocation7], %s197
          %s199 = sshll.u32 [#allocation6], 4
          %s200 = int_to_ptr.vmem [resolvable:$true] %s199
          %205 = dma.hbm_to_vmem [thread:$0]  %s1, 2048, %s200, [#allocation7], 256, 256, 16
        $region16: #{mlp_projector_pallas.1} parent=11 // pred_fallthru
          _
        // Predicated region
        $region17: #{mlp_projector_pallas.1} parent=11 // pred_check
          %p206 = pneg %p98
        $region18: #{mlp_projector_pallas.1} parent=11 // pred_check_branch
          %208 = sbr.rel (%p206) target = $region20
        $region19: #{mlp_projector_pallas.1} parent=11 // pred_region
          _
        $region20: #{mlp_projector_pallas.1} parent=11 // pred_fallthru
          _
        // Predicated region
        $region21: #{mlp_projector_pallas.1} parent=11 // pred_check
          %p209 = pneg %p124
        $region22: #{mlp_projector_pallas.1} parent=11 // pred_check_branch
          %211 = sbr.rel (%p209) target = $region24
        $region23: #{mlp_projector_pallas.1} parent=11 // pred_region
          %s212 = smul.u32 2, %s28
          %s214 = ssub.s32 8192, 8192
          %215 = vsyncadd [#allocation7], %s214
          %s216 = smul.addr %s212, 128
          %s217 = scalar_lea.hbm %s3, %s216
          %s218 = sshll.u32 [#allocation8], 4
          %s219 = int_to_ptr.vmem [resolvable:$true] %s218
          %224 = dma.hbm_to_vmem [thread:$0]  %s217, 8192, %s219, [#allocation7], 256, 256, 16
        $region24: #{mlp_projector_pallas.1} parent=11 // pred_fallthru
          _
        // Predicated region
        $region25: #{mlp_projector_pallas.1} parent=11 // pred_check
          %p225 = pneg %p150
        $region26: #{mlp_projector_pallas.1} parent=11 // pred_check_branch
          %227 = sbr.rel (%p225) target = $region28
        $region27: #{mlp_projector_pallas.1} parent=11 // pred_region
          %s228 = smul.u32 2, %s28
          %p229 = scmp.lt.s32.totalorder %s228, 1
          %s230 = scalar_select %p229, %s228, 1
          %s231 = scalar_lea.vmem %s4, %s230
          %s232 = smul.u32 2, %s28
        $region28: #{mlp_projector_pallas.1} parent=11 // pred_fallthru
          _
      $region12: #{mlp_projector_pallas.1} parent=5 // pred_fallthru
        _
      %p233 = scmp.lt.s32.totalorder %s18, 2
      // Predicated region
      $region29: #{mlp_projector_pallas.1} parent=5 // pred_check
        %p234 = pneg %p233
      $region30: #{mlp_projector_pallas.1} parent=5 // pred_check_branch
        %236 = sbr.rel (%p234) target = $region32
      $region31: #{mlp_projector_pallas.1} parent=5 // pred_region
        // Predicated region
        $region33: #{mlp_projector_pallas.1} parent=31 // pred_check
          %p237 = pneg %p50
        $region34: #{mlp_projector_pallas.1} parent=31 // pred_check_branch
          %239 = sbr.rel (%p237) target = $region36
        $region35: #{mlp_projector_pallas.1} parent=31 // pred_region
          %s240 = sand.u32 %s40, 1
          %s241 = scalar_lea.sflag [#allocation4], %s240
          %s242 = sand.u32 %s40, 1
          %s243 = smul.addr %s242, 8
          %s244 = scalar_lea.vmem [#allocation3], %s243
          %s246 = ssub.s32 128, 128
          %247 = vsyncadd %s241, %s246
          %s248 = smul.addr %s25, 128
          %s249 = scalar_lea.hbm %s0, %s248
          %s251 = sshll.u32 %s244, 4
          %s252 = int_to_ptr.vmem [resolvable:$true] %s251
          %254 = dma.hbm_to_vmem [thread:$0]  %s249, 128, %s252, %s241
        $region36: #{mlp_projector_pallas.1} parent=31 // pred_fallthru
          _
      $region32: #{mlp_projector_pallas.1} parent=5 // pred_fallthru
        _
      %p255 = scmp.le.s32.totalorder 1, %s18
      %p256 = scmp.lt.s32.totalorder %s18, 3
      %p257 = pnand %p255, %p256
      %p258 = pneg %p257
      // Predicated region
      $region37: #{mlp_projector_pallas.1} parent=5 // pred_check
        _
      $region38: #{mlp_projector_pallas.1} parent=5 // pred_check_branch
        %260 = sbr.rel (%p257) target = $region40
      $region39: #{mlp_projector_pallas.1} parent=5 // pred_region
        %s261 = ssub.s32 %s18, 1
        %s262 = sand.u32 %s43, 1
        %s263 = scalar_lea.sflag [#allocation4], %s262
        %s264 = sand.u32 %s43, 1
        %s265 = smul.addr %s264, 8
        %s266 = scalar_lea.vmem [#allocation3], %s265
        // Predicated region
        $region41: #{mlp_projector_pallas.1} parent=39 // pred_check
          %p267 = pneg %p56
        $region42: #{mlp_projector_pallas.1} parent=39 // pred_check_branch
          %269 = sbr.rel (%p267) target = $region44
        $region43: #{mlp_projector_pallas.1} parent=39 // pred_region
          %270 = dma.done %s263, 128
        $region44: #{mlp_projector_pallas.1} parent=39 // pred_fallthru
          _
        // Predicated region
        $region45: #{mlp_projector_pallas.1} parent=39 // pred_check
          %p271 = pneg %p77
        $region46: #{mlp_projector_pallas.1} parent=39 // pred_check_branch
          %273 = sbr.rel (%p271) target = $region48
        $region47: #{mlp_projector_pallas.1} parent=39 // pred_region
          %274 = dma.done [#allocation7], 2048
        $region48: #{mlp_projector_pallas.1} parent=39 // pred_fallthru
          _
        // Predicated region
        $region49: #{mlp_projector_pallas.1} parent=39 // pred_check
          %p275 = pneg %p124
        $region50: #{mlp_projector_pallas.1} parent=39 // pred_check_branch
          %277 = sbr.rel (%p275) target = $region52
        $region51: #{mlp_projector_pallas.1} parent=39 // pred_region
          %278 = dma.done [#allocation7], 8192
        $region52: #{mlp_projector_pallas.1} parent=39 // pred_fallthru
          _
        %s279 = sand.u32 %s43, 1
        %s280 = scalar_lea.sflag [#allocation4], %s279
        %s281 = sand.u32 %s43, 1
        %s282 = smul.addr %s281, 8
        %s283 = scalar_lea.vmem [#allocation3], %s282
        %p284 = pneg %p56
        %p285 = pneg %p53
        %p286 = pneg %p77
        %p287 = pneg %p74
        %p288 = pneg %p98
        %p289 = pneg %p95
        %p290 = pneg %p124
        %p291 = pneg %p121
        %s292 = smul.u32 2, %s28
        %p293 = scmp.lt.s32.totalorder %s292, 1
        %s294 = scalar_select %p293, %s292, 1
        %s295 = scalar_lea.vmem %s4, %s294
        %p296 = pneg %p150
        %p297 = pneg %p147
        %p298 = pneg %p178
        %p299 = pneg %p175
        %s300 = sand.u32 %s165, 1
        %s301 = scalar_lea.sflag [#allocation5], %s300
        %s302 = sand.u32 %s165, 1
        %s303 = smul.addr %s302, 16
        %s304 = scalar_lea.vmem [#allocation9], %s303
        %s305 = smul.u32 2, %s28
        %s306 = smul.u32 2, %s28
        %p307 = scmp.lt.s32.totalorder %s306, 1
        %s308 = scalar_select %p307, %s306, 1
        %s309 = scalar_lea.vmem %s4, %s308
        %s310 = smul.u32 2, %s28
        %s311 = smul.u32 2, %s28
        %p312 = scmp.eq.s32.totalorder %s28, 0
        // Predicated region
        $region53: #{mlp_projector_pallas.1} parent=39 // pred_check
          %p313 = pneg %p312
        $region54: #{mlp_projector_pallas.1} parent=39 // pred_check_branch
          %315 = sbr.rel (%p313) target = $region56
        $region55: #{mlp_projector_pallas.1} parent=39 // pred_region
          %v316 = vld [vmem:[%s266] sm:$0xff]
          %v317 = vld [vmem:[#allocation6] sm:$0xff]
          %v318 = vld [vmem:[#allocation6 + $0x8] sm:$0xff]
          %v319 = vld [vmem:[#allocation6 + $0x10] sm:$0xff]
          %v320 = vld [vmem:[#allocation6 + $0x18] sm:$0xff]
          %v321 = vld [vmem:[#allocation6 + $0x20] sm:$0xff]
          %v322 = vld [vmem:[#allocation6 + $0x28] sm:$0xff]
          %v323 = vld [vmem:[#allocation6 + $0x30] sm:$0xff]
          %v324 = vld [vmem:[#allocation6 + $0x38] sm:$0xff]
          %v325 = vld [vmem:[#allocation6 + $0x40] sm:$0xff]
          %v326 = vld [vmem:[#allocation6 + $0x48] sm:$0xff]
          %v327 = vld [vmem:[#allocation6 + $0x50] sm:$0xff]
          %v328 = vld [vmem:[#allocation6 + $0x58] sm:$0xff]
          %v329 = vld [vmem:[#allocation6 + $0x60] sm:$0xff]
          %v330 = vld [vmem:[#allocation6 + $0x68] sm:$0xff]
          %v331 = vld [vmem:[#allocation6 + $0x70] sm:$0xff]
          %v332 = vld [vmem:[#allocation6 + $0x78] sm:$0xff]
          %v333 = vld [vmem:[%s2] sm:$0x3]
          %v335 = vlaneseq
          %v336 = vshrl.u32 %v335, 7
          %v337 = vsub.s32 0, %v336
          %v338 = vrot.slane %v333, %v337
          %v339 = vlaneseq
          %v340 = vshrl.u32 %v339, 7
          %v341 = vsub.s32 1, %v340
          %v342 = vrot.slane %v333, %v341
          %vm345 = vcmask 523264
          %v347 = vsel %vm345, %v316, 0
          %349 = vmatprep.subr.mxu0 0.0
          %350 = vmatpush1.msra.mxu0 0.0
          %351 = vmatprep.subr.mxu0 0.0
          %352 = vmatpush1.msra.mxu0 0.0
          %353 = vmatprep.subr.mxu0 0.0
          %354 = vmatpush1.msra.mxu0 0.0
          %355 = vmatprep.subr.mxu0 0.0
          %356 = vmatpush1.msra.mxu0 0.0
          %357 = vmatprep.subr.mxu0 0.0
          %358 = vmatpush1.msra.mxu0 0.0
          %359 = vmatprep.subr.mxu0 0.0
          %360 = vmatpush1.msra.mxu0 0.0
          %361 = vmatprep.subr.mxu0 0.0
          %362 = vmatpush1.msra.mxu0 0.0
          %363 = vmatprep.subr.mxu0 0.0
          %364 = vmatpush1.msra.mxu0 0.0
          %365 = vmatprep.subr.mxu0 %v332
          %366 = vmatpush1.msra.mxu0 %v331
          %367 = vmatprep.subr.mxu0 %v330
          %368 = vmatpush1.msra.mxu0 %v329
          %369 = vmatprep.subr.mxu0 %v328
          %370 = vmatpush1.msra.mxu0 %v327
          %371 = vmatprep.subr.mxu0 %v326
          %372 = vmatpush1.msra.mxu0 %v325
          %373 = vmatprep.subr.mxu0 %v324
          %374 = vmatpush1.msra.mxu0 %v323
          %375 = vmatprep.subr.mxu0 %v322
          %376 = vmatpush1.msra.mxu0 %v321
          %377 = vmatprep.subr.mxu0 %v320
          %378 = vmatpush1.msra.mxu0 %v319
          %379 = vmatprep.subr.mxu0 %v318
          %380 = vmatpush1.msra.mxu0 %v317
          %381 = vmatprep.subr.mxu0 0.0
          %382 = vmatpush2.msra.mxu0 0.0
          %383 = vmatprep.subr.mxu0 0.0
          %384 = vmatpush2.msra.mxu0 0.0
          %385 = vmatprep.subr.mxu0 0.0
          %386 = vmatpush2.msra.mxu0 0.0
          %387 = vmatprep.subr.mxu0 0.0
          %388 = vmatpush2.msra.mxu0 0.0
          %389 = vmatprep.subr.mxu0 0.0
          %390 = vmatpush2.msra.mxu0 0.0
          %391 = vmatprep.subr.mxu0 0.0
          %392 = vmatpush2.msra.mxu0 0.0
          %393 = vmatprep.subr.mxu0 0.0
          %394 = vmatpush2.msra.mxu0 0.0
          %395 = vmatprep.subr.mxu0 0.0
          %396 = vmatpush2.msra.mxu0 0.0
          %397 = vmatprep.subr.mxu0 0.0
          %398 = vmatpush2.msra.mxu0 0.0
          %399 = vmatprep.subr.mxu0 0.0
          %400 = vmatpush2.msra.mxu0 0.0
          %401 = vmatprep.subr.mxu0 0.0
          %402 = vmatpush2.msra.mxu0 0.0
          %403 = vmatprep.subr.mxu0 0.0
          %404 = vmatpush2.msra.mxu0 0.0
          %405 = vmatprep.subr.mxu0 0.0
          %406 = vmatpush2.msra.mxu0 0.0
          %407 = vmatprep.subr.mxu0 0.0
          %408 = vmatpush2.msra.mxu0 0.0
          %409 = vmatprep.subr.mxu0 0.0
          %410 = vmatpush2.msra.mxu0 0.0
          %411 = vmatprep.subr.mxu0 0.0
          %412 = vmatpush2.msra.mxu0 0.0
          %413 = vmatprep.mubr.f32.mxu0 0.0
          %414 = vmatmul.mubr.f32.gmra.mxu0 %v347
          %v415 = vpop.f32.mrf.mxu0
          %v416 = vadd.f32 %v338, %v415
          %v417 = vpop.f32.mrf.mxu0
          %v418 = vadd.f32 %v342, %v417
          %419 = vdwg.mxu0
          %v420 = vmul.f32 %v416, 0.5
          %v421 = vmul.f32 %v418, 0.5
          %v422 = vmul.f32 %v416, 0.70710677
          %v423 = vmul.f32 %v418, 0.70710677
          %v424 = verf.f32.pop %v422
          %v425 = verf.f32.pop %v423
          %v426 = vadd.f32 %v424, 1.0
          %v427 = vadd.f32 %v425, 1.0
          %v428 = vmul.f32 %v420, %v426
          %v429 = vmul.f32 %v421, %v427
          %430 = vst [vmem:[#allocation2] sm:$0xff] %v428
          %431 = vst [vmem:[#allocation2 + $0x8] sm:$0xff] %v429
        $region56: #{mlp_projector_pallas.1} parent=39 // pred_fallthru
          _
        %v432 = vld [vmem:[#allocation2] sm:$0xff]
        %v433 = vld [vmem:[#allocation2 + $0x8] sm:$0xff]
        %v434 = vld [vmem:[#allocation8] sm:$0xff]
        %v435 = vld [vmem:[#allocation8 + $0x8] sm:$0xff]
        %v436 = vld [vmem:[#allocation8 + $0x10] sm:$0xff]
        %v437 = vld [vmem:[#allocation8 + $0x18] sm:$0xff]
        %v438 = vld [vmem:[#allocation8 + $0x20] sm:$0xff]
        %v439 = vld [vmem:[#allocation8 + $0x28] sm:$0xff]
        %v440 = vld [vmem:[#allocation8 + $0x30] sm:$0xff]
        %v441 = vld [vmem:[#allocation8 + $0x38] sm:$0xff]
        %v442 = vld [vmem:[#allocation8 + $0x40] sm:$0xff]
        %v443 = vld [vmem:[#allocation8 + $0x48] sm:$0xff]
        %v444 = vld [vmem:[#allocation8 + $0x50] sm:$0xff]
        %v445 = vld [vmem:[#allocation8 + $0x58] sm:$0xff]
        %v446 = vld [vmem:[#allocation8 + $0x60] sm:$0xff]
        %v447 = vld [vmem:[#allocation8 + $0x68] sm:$0xff]
        %v448 = vld [vmem:[#allocation8 + $0x70] sm:$0xff]
        %v449 = vld [vmem:[#allocation8 + $0x78] sm:$0xff]
        %v450 = vld [vmem:[#allocation8 + $0x80] sm:$0xff]
        %v451 = vld [vmem:[#allocation8 + $0x88] sm:$0xff]
        %v452 = vld [vmem:[#allocation8 + $0x90] sm:$0xff]
        %v453 = vld [vmem:[#allocation8 + $0x98] sm:$0xff]
        %v454 = vld [vmem:[#allocation8 + $0xa0] sm:$0xff]
        %v455 = vld [vmem:[#allocation8 + $0xa8] sm:$0xff]
        %v456 = vld [vmem:[#allocation8 + $0xb0] sm:$0xff]
        %v457 = vld [vmem:[#allocation8 + $0xb8] sm:$0xff]
        %v458 = vld [vmem:[#allocation8 + $0xc0] sm:$0xff]
        %v459 = vld [vmem:[#allocation8 + $0xc8] sm:$0xff]
        %v460 = vld [vmem:[#allocation8 + $0xd0] sm:$0xff]
        %v461 = vld [vmem:[#allocation8 + $0xd8] sm:$0xff]
        %v462 = vld [vmem:[#allocation8 + $0xe0] sm:$0xff]
        %v463 = vld [vmem:[#allocation8 + $0xe8] sm:$0xff]
        %v464 = vld [vmem:[#allocation8 + $0xf0] sm:$0xff]
        %v465 = vld [vmem:[#allocation8 + $0xf8] sm:$0xff]
        %v466 = vld [vmem:[#allocation8 + $0x100] sm:$0xff]
        %v467 = vld [vmem:[#allocation8 + $0x108] sm:$0xff]
        %v468 = vld [vmem:[#allocation8 + $0x110] sm:$0xff]
        %v469 = vld [vmem:[#allocation8 + $0x118] sm:$0xff]
        %v470 = vld [vmem:[#allocation8 + $0x120] sm:$0xff]
        %v471 = vld [vmem:[#allocation8 + $0x128] sm:$0xff]
        %v472 = vld [vmem:[#allocation8 + $0x130] sm:$0xff]
        %v473 = vld [vmem:[#allocation8 + $0x138] sm:$0xff]
        %v474 = vld [vmem:[#allocation8 + $0x140] sm:$0xff]
        %v475 = vld [vmem:[#allocation8 + $0x148] sm:$0xff]
        %v476 = vld [vmem:[#allocation8 + $0x150] sm:$0xff]
        %v477 = vld [vmem:[#allocation8 + $0x158] sm:$0xff]
        %v478 = vld [vmem:[#allocation8 + $0x160] sm:$0xff]
        %v479 = vld [vmem:[#allocation8 + $0x168] sm:$0xff]
        %v480 = vld [vmem:[#allocation8 + $0x170] sm:$0xff]
        %v481 = vld [vmem:[#allocation8 + $0x178] sm:$0xff]
        %v482 = vld [vmem:[#allocation8 + $0x180] sm:$0xff]
        %v483 = vld [vmem:[#allocation8 + $0x188] sm:$0xff]
        %v484 = vld [vmem:[#allocation8 + $0x190] sm:$0xff]
        %v485 = vld [vmem:[#allocation8 + $0x198] sm:$0xff]
        %v486 = vld [vmem:[#allocation8 + $0x1a0] sm:$0xff]
        %v487 = vld [vmem:[#allocation8 + $0x1a8] sm:$0xff]
        %v488 = vld [vmem:[#allocation8 + $0x1b0] sm:$0xff]
        %v489 = vld [vmem:[#allocation8 + $0x1b8] sm:$0xff]
        %v490 = vld [vmem:[#allocation8 + $0x1c0] sm:$0xff]
        %v491 = vld [vmem:[#allocation8 + $0x1c8] sm:$0xff]
        %v492 = vld [vmem:[#allocation8 + $0x1d0] sm:$0xff]
        %v493 = vld [vmem:[#allocation8 + $0x1d8] sm:$0xff]
        %v494 = vld [vmem:[#allocation8 + $0x1e0] sm:$0xff]
        %v495 = vld [vmem:[#allocation8 + $0x1e8] sm:$0xff]
        %v496 = vld [vmem:[#allocation8 + $0x1f0] sm:$0xff]
        %v497 = vld [vmem:[#allocation8 + $0x1f8] sm:$0xff]
        %v498 = vld [vmem:[%s309] sm:$0x3]
        %v500 = vlaneseq
        %v501 = vshrl.u32 %v500, 7
        %v502 = vsub.s32 0, %v501
        %v503 = vrot.slane %v498, %v502
        %v504 = vlaneseq
        %v505 = vshrl.u32 %v504, 7
        %v506 = vsub.s32 1, %v505
        %v507 = vrot.slane %v498, %v506
        %510 = vmatprep.subr.mxu0 %v465
        %511 = vmatpush1.msra.mxu0 %v464
        %512 = vmatprep.subr.mxu0 %v463
        %513 = vmatpush1.msra.mxu0 %v462
        %514 = vmatprep.subr.mxu0 %v461
        %515 = vmatpush1.msra.mxu0 %v460
        %516 = vmatprep.subr.mxu0 %v459
        %517 = vmatpush1.msra.mxu0 %v458
        %518 = vmatprep.subr.mxu0 %v457
        %519 = vmatpush1.msra.mxu0 %v456
        %520 = vmatprep.subr.mxu0 %v455
        %521 = vmatpush1.msra.mxu0 %v454
        %522 = vmatprep.subr.mxu0 %v453
        %523 = vmatpush1.msra.mxu0 %v452
        %524 = vmatprep.subr.mxu0 %v451
        %525 = vmatpush1.msra.mxu0 %v450
        %526 = vmatprep.subr.mxu0 %v449
        %527 = vmatpush1.msra.mxu0 %v448
        %528 = vmatprep.subr.mxu0 %v447
        %529 = vmatpush1.msra.mxu0 %v446
        %530 = vmatprep.subr.mxu0 %v445
        %531 = vmatpush1.msra.mxu0 %v444
        %532 = vmatprep.subr.mxu0 %v443
        %533 = vmatpush1.msra.mxu0 %v442
        %534 = vmatprep.subr.mxu0 %v441
        %535 = vmatpush1.msra.mxu0 %v440
        %536 = vmatprep.subr.mxu0 %v439
        %537 = vmatpush1.msra.mxu0 %v438
        %538 = vmatprep.subr.mxu0 %v437
        %539 = vmatpush1.msra.mxu0 %v436
        %540 = vmatprep.subr.mxu0 %v435
        %541 = vmatpush1.msra.mxu0 %v434
        %542 = vmatprep.subr.mxu0 %v497
        %543 = vmatpush2.msra.mxu0 %v496
        %544 = vmatprep.subr.mxu0 %v495
        %545 = vmatpush2.msra.mxu0 %v494
        %546 = vmatprep.subr.mxu0 %v493
        %547 = vmatpush2.msra.mxu0 %v492
        %548 = vmatprep.subr.mxu0 %v491
        %549 = vmatpush2.msra.mxu0 %v490
        %550 = vmatprep.subr.mxu0 %v489
        %551 = vmatpush2.msra.mxu0 %v488
        %552 = vmatprep.subr.mxu0 %v487
        %553 = vmatpush2.msra.mxu0 %v486
        %554 = vmatprep.subr.mxu0 %v485
        %555 = vmatpush2.msra.mxu0 %v484
        %556 = vmatprep.subr.mxu0 %v483
        %557 = vmatpush2.msra.mxu0 %v482
        %558 = vmatprep.subr.mxu0 %v481
        %559 = vmatpush2.msra.mxu0 %v480
        %560 = vmatprep.subr.mxu0 %v479
        %561 = vmatpush2.msra.mxu0 %v478
        %562 = vmatprep.subr.mxu0 %v477
        %563 = vmatpush2.msra.mxu0 %v476
        %564 = vmatprep.subr.mxu0 %v475
        %565 = vmatpush2.msra.mxu0 %v474
        %566 = vmatprep.subr.mxu0 %v473
        %567 = vmatpush2.msra.mxu0 %v472
        %568 = vmatprep.subr.mxu0 %v471
        %569 = vmatpush2.msra.mxu0 %v470
        %570 = vmatprep.subr.mxu0 %v469
        %571 = vmatpush2.msra.mxu0 %v468
        %572 = vmatprep.subr.mxu0 %v467
        %573 = vmatpush2.msra.mxu0 %v466
        %574 = vmatprep.mubr.f32.mxu0 %v433
        %575 = vmatmul.mubr.f32.gmra.mxu0 %v432
        %v576 = vpop.f32.mrf.mxu0
        %v577 = vadd.f32 %v503, %v576
        %v578 = vpop.f32.mrf.mxu0
        %v579 = vadd.f32 %v507, %v578
        %580 = vdwg.mxu0
        %581 = vst [vmem:[%s304] sm:$0xff] %v577
        %582 = vst [vmem:[%s304 + $0x8] sm:$0xff] %v579
        %s583 = sand.u32 %s165, 1
        %s584 = scalar_lea.sflag [#allocation5], %s583
        %s585 = sand.u32 %s165, 1
        %s586 = smul.addr %s585, 16
        %s587 = scalar_lea.vmem [#allocation9], %s586
        // Predicated region
        $region57: #{mlp_projector_pallas.1} parent=39 // pred_check
          %p588 = pneg %p175
        $region58: #{mlp_projector_pallas.1} parent=39 // pred_check_branch
          %590 = sbr.rel (%p588) target = $region60
        $region59: #{mlp_projector_pallas.1} parent=39 // pred_region
          %s591 = smul.u32 2, %s28
          %s593 = ssub.s32 256, 256
          %594 = vsyncadd %s584, %s593
          %s595 = smul.addr %s27, 2
          %s596 = sadd.s32 %s591, %s595
          %s597 = smul.addr %s596, 128
          %s598 = scalar_lea.hbm %s5, %s597
          %s600 = sshll.u32 %s587, 4
          %s601 = int_to_ptr.vmem [resolvable:$true] %s600
          %603 = dma.vmem_to_hbm [thread:$0]  %s601, 256, %s598, %s584
        $region60: #{mlp_projector_pallas.1} parent=39 // pred_fallthru
          _
      $region40: #{mlp_projector_pallas.1} parent=5 // pred_fallthru
        _
      %p604 = scmp.le.s32.totalorder 2, %s18
      // Predicated region
      $region61: #{mlp_projector_pallas.1} parent=5 // pred_check
        %p605 = pneg %p604
      $region62: #{mlp_projector_pallas.1} parent=5 // pred_check_branch
        %607 = sbr.rel (%p605) target = $region64
      $region63: #{mlp_projector_pallas.1} parent=5 // pred_region
        %s608 = ssub.s32 %s18, 2
        // Predicated region
        $region65: #{mlp_projector_pallas.1} parent=63 // pred_check
          %p609 = pneg %p181
        $region66: #{mlp_projector_pallas.1} parent=63 // pred_check_branch
          %611 = sbr.rel (%p609) target = $region68
        $region67: #{mlp_projector_pallas.1} parent=63 // pred_region
          %s612 = sand.u32 %s166, 1
          %s613 = scalar_lea.sflag [#allocation5], %s612
          %s614 = sand.u32 %s166, 1
          %s615 = smul.addr %s614, 16
          %s616 = scalar_lea.vmem [#allocation9], %s615
          %617 = dma.done %s613, 256
        $region68: #{mlp_projector_pallas.1} parent=63 // pred_fallthru
          _
      $region64: #{mlp_projector_pallas.1} parent=5 // pred_fallthru
        _
    $region6: #{mlp_projector_pallas.1} parent=1 // loop_footer
      %s22 = sadd.s32 1, %s18
    $region7: #{mlp_projector_pallas.1} parent=1 // loop_footer_branch
      %17 = sbr.rel target = $region3
    $region8: #{mlp_projector_pallas.1} parent=1 // loop_exit
      _
    %618 = vsyncpa [#allocation4], 1
    %s619 = scalar_lea.sflag [#allocation4], 1
    %620 = vsyncpa %s619, 1
    %621 = vsyncpa [#allocation7], 1
    %622 = vsyncpa [#allocation5], 1
    %s623 = scalar_lea.sflag [#allocation5], 1
    %624 = vsyncpa %s623, 1

</llo_original>
